<compile_context>
chip_gen: v7x
topology: tpu7x:2x2x1
jax: 0.10.0
libtpu: 0.0.40
codegen_flags: <defaults>
</compile_context>

<pallas_src>
import functools

import jax
import jax.numpy as jnp
from jax import lax
from jax.experimental import pallas as pl
from jax.experimental.pallas import tpu as pltpu


def _round_up(a, b):
    return (a + b - 1) // b * b


def _gmm_kernel(x_ref, w_ref, b_ref, o_ref, *,
                stds_index, weights_index, d_real, matmul_dtype):
    # tanh activation in f32 (accurate on all generations; v5e has no bf16 EUP).
    x = jnp.tanh(x_ref[...].astype(jnp.float32))
    w = w_ref[...]

    if matmul_dtype is not None:
        # bf16 operands -> native MXU rate on v6e/v7x, f32 accumulation.
        x = x.astype(matmul_dtype)
        w = w.astype(matmul_dtype)
    else:
        w = w.astype(jnp.float32)

    # Linear layer on the MXU: (tm, H_pad) @ (H_pad, D_pad) + (1, D_pad).
    out = jnp.dot(x, w, preferred_element_type=jnp.float32)
    out = out + b_ref[...].astype(jnp.float32)

    # Region masks from a single (1, D_pad) iota, broadcast over rows.
    # Padded lanes (idx >= d_real) fall in neither region -> pass through and
    # are sliced off in the wrapper.
    idx = lax.broadcasted_iota(jnp.int32, (1, out.shape[-1]), 1)
    is_std = jnp.logical_and(idx >= stds_index, idx < weights_index)
    is_wgt = jnp.logical_and(idx >= weights_index, idx < d_real)

    # Stable softmax max over the weights region only.
    wvals = jnp.where(is_wgt, out, -jnp.inf)
    wmax = jnp.max(wvals, axis=-1, keepdims=True)

    # Fused exp: stds lanes get exp(out), weight lanes get exp(out - wmax).
    shift = jnp.where(is_wgt, wmax, 0.0)
    e = jnp.exp(out - shift)

    wexp = jnp.where(is_wgt, e, 0.0)
    wsum = jnp.sum(wexp, axis=-1, keepdims=True)
    wsoft = wexp * pl.reciprocal(wsum, approx=True)

    out = jnp.where(is_std, e, out)
    out = jnp.where(is_wgt, wsoft, out)
    o_ref[...] = out.astype(o_ref.dtype)


def gmm_cell_forward(x, weight, bias, *, input_size, M,
                     tile_rows=512, matmul_dtype=None):
    """x: (batch, n_nodes, hidden); weight: (hidden, D); bias: (D,) with
    D = input_size*M + 2*M. Returns (batch, n_nodes, D).

    tile_rows: rows per grid step (multiple of 8; sweep per chip).
    matmul_dtype: e.g. jnp.bfloat16 to feed the MXU natively (v6e/v7x)."""
    B, N, H = x.shape
    D = input_size * M + 2 * M
    assert weight.shape == (H, D)
    assert bias.shape == (D,)

    # Lane-align the contraction and output feature dims.
    H_pad = _round_up(H, 128)
    D_pad = _round_up(D, 128)

    R = B * N
    # Clamp the row tile to the (padded) problem size; keep it a multiple of 8.
    tm = min(_round_up(tile_rows, 8), _round_up(R, 8))
    R_pad = _round_up(R, tm)

    x2d = x.reshape(R, H)
    x2d = jnp.pad(x2d, ((0, R_pad - R), (0, H_pad - H)))
    w_p = jnp.pad(weight, ((0, H_pad - H), (0, D_pad - D)))
    b_p = jnp.pad(bias, (0, D_pad - D)).reshape(1, D_pad)

    kernel = functools.partial(
        _gmm_kernel,
        stds_index=input_size * M,
        weights_index=(input_size + 1) * M,
        d_real=D,
        matmul_dtype=matmul_dtype,
    )

    # VMEM (double-buffered x/out tiles + resident weight/bias): for tm=512,
    # H_pad=D_pad=128 this is ~1 MiB -> fits every generation's scoped default.
    out2d = pl.pallas_call(
        kernel,
        out_shape=jax.ShapeDtypeStruct((R_pad, D_pad), x.dtype),
        grid_spec=pltpu.PrefetchScalarGridSpec(
            num_scalar_prefetch=0,
            grid=(R_pad // tm,),
            in_specs=[
                pl.BlockSpec((tm, H_pad), lambda i: (i, 0)),     # x tile
                pl.BlockSpec((H_pad, D_pad), lambda i: (0, 0)),  # full weight
                pl.BlockSpec((1, D_pad), lambda i: (0, 0)),      # bias row
            ],
            out_specs=pl.BlockSpec((tm, D_pad), lambda i: (i, 0)),
        ),
        compiler_params=pltpu.CompilerParams(
            dimension_semantics=("parallel",)),
    )(x2d, w_p, b_p)

    return out2d[:R, :D].reshape(B, N, D)


def gmm_cell_reference(x, weight, bias, *, input_size, M):
    """Pure-JAX reference mirroring the PyTorch forward."""
    out = jnp.tanh(x) @ weight + bias
    si = input_size * M
    wi = (input_size + 1) * M
    stds = jnp.exp(out[..., si:wi])
    wgts = jax.nn.softmax(out[..., wi:], axis=-1)
    return jnp.concatenate([out[..., :si], stds, wgts], axis=-1)


if __name__ == "__main__":
    # Small, module-consistent shapes.
    batch, n_nodes, hidden_size = 2, 16, 32
    input_size, M = 4, 4
    D = input_size * M + 2 * M  # 24

    key = jax.random.PRNGKey(0)
    kx, kw, kb = jax.random.split(key, 3)

    x = jax.random.normal(kx, (batch, n_nodes, hidden_size), dtype=jnp.float32)
    # Deterministic Linear params (PyTorch stores (out, in); we keep (in, out)).
    bound = 1.0 / jnp.sqrt(hidden_size)
    weight = jax.random.uniform(kw, (hidden_size, D), dtype=jnp.float32,
                                minval=-bound, maxval=bound)
    bias = jax.random.uniform(kb, (D,), dtype=jnp.float32,
                              minval=-bound, maxval=bound)

    ref = gmm_cell_reference(x, weight, bias, input_size=input_size, M=M)

    # f32 MXU path.
    out = gmm_cell_forward(x, weight, bias, input_size=input_size, M=M)
    out = jax.block_until_ready(out)
    assert out.shape == (batch, n_nodes, D)
    # approx=True reciprocal in the softmax -> slightly looser tolerance.
    assert jnp.allclose(out, ref, atol=5e-3, rtol=5e-3), "mismatch vs reference (f32)"

    # bf16 MXU path (native rate on v6e/v7x; f32 accumulation).
    out_bf16 = gmm_cell_forward(x, weight, bias, input_size=input_size, M=M,
                                matmul_dtype=jnp.bfloat16)
    out_bf16 = jax.block_until_ready(out_bf16)
    assert jnp.allclose(out_bf16, ref, atol=5e-2, rtol=5e-2), "mismatch vs reference (bf16)"

    print("KERNEL_OK")
</pallas_src>

<mosaic_0001>
module attributes {stable_mosaic.version = 11 : i64} {
  func.func @_gmm_kernel(%arg0: i32, %arg1: memref<32x128xf32, #tpu.memory_space<vmem>>, %arg2: memref<128x128xf32, #tpu.memory_space<vmem>>, %arg3: memref<1x128xf32, #tpu.memory_space<vmem>>, %arg4: memref<32x128xf32, #tpu.memory_space<vmem>>) attributes {dimension_semantics = [#tpu.dimension_semantics<parallel>], iteration_bounds = array<i64: 1>, scalar_prefetch = 0 : i64, scratch_operands = 0 : i64, tpu.core_type = #tpu.core_type<tc>, window_params = [{transform_indices = @transform_0, window_bounds = array<i64: 32, 128>}, {pipeline_mode = #tpu.pipeline_mode<synchronous>, transform_indices = @transform_1, window_bounds = array<i64: 128, 128>}, {pipeline_mode = #tpu.pipeline_mode<synchronous>, transform_indices = @transform_2, window_bounds = array<i64: 1, 128>}, {transform_indices = @transform_3, window_bounds = array<i64: 32, 128>}]} {
    %c0 = arith.constant 0 : index
    %c0_0 = arith.constant 0 : index
    %0 = vector.load %arg1[%c0, %c0_0] : memref<32x128xf32, #tpu.memory_space<vmem>>, vector<32x128xf32>
    %1 = math.tanh %0 : vector<32x128xf32>
    %c0_1 = arith.constant 0 : index
    %c0_2 = arith.constant 0 : index
    %2 = vector.load %arg2[%c0_1, %c0_2] : memref<128x128xf32, #tpu.memory_space<vmem>>, vector<128x128xf32>
    %cst = arith.constant dense<0.000000e+00> : vector<32x128xf32>
    %3 = tpu.matmul %1, %2, %cst {dimension_numbers = #tpu.dot_dimension_numbers<[1], [0], [0], [1], [0, 0, 1, 1], [], []>} : vector<32x128xf32>, vector<128x128xf32>, vector<32x128xf32> -> vector<32x128xf32>
    %c0_3 = arith.constant 0 : index
    %c0_4 = arith.constant 0 : index
    %4 = vector.load %arg3[%c0_3, %c0_4] : memref<1x128xf32, #tpu.memory_space<vmem>>, vector<1x128xf32>
    %5 = vector.broadcast %4 : vector<1x128xf32> to vector<32x128xf32>
    %6 = arith.addf %3, %5 : vector<32x128xf32>
    %7 = tpu.iota {dimensions = array<i32: 1>} : vector<1x128xi32>
    %c16_i32 = arith.constant 16 : i32
    %8 = vector.broadcast %c16_i32 : i32 to vector<1x128xi32>
    %9 = arith.cmpi sge, %7, %8 : vector<1x128xi32>
    %c20_i32 = arith.constant 20 : i32
    %10 = vector.broadcast %c20_i32 : i32 to vector<1x128xi32>
    %11 = arith.cmpi slt, %7, %10 : vector<1x128xi32>
    %12 = arith.andi %9, %11 : vector<1x128xi1>
    %c20_i32_5 = arith.constant 20 : i32
    %13 = vector.broadcast %c20_i32_5 : i32 to vector<1x128xi32>
    %14 = arith.cmpi sge, %7, %13 : vector<1x128xi32>
    %c24_i32 = arith.constant 24 : i32
    %15 = vector.broadcast %c24_i32 : i32 to vector<1x128xi32>
    %16 = arith.cmpi slt, %7, %15 : vector<1x128xi32>
    %17 = arith.andi %14, %16 : vector<1x128xi1>
    %cst_6 = arith.constant 0xFF800000 : f32
    %18 = vector.shape_cast %17 : vector<1x128xi1> to vector<1x128xi1>
    %19 = vector.broadcast %18 : vector<1x128xi1> to vector<32x128xi1>
    %20 = vector.broadcast %cst_6 : f32 to vector<32x128xf32>
    %21 = arith.select %19, %6, %20 : vector<32x128xi1>, vector<32x128xf32>
    %cst_7 = arith.constant dense<0xFF800000> : vector<32xf32>
    %22 = vector.multi_reduction <maximumf>, %21, %cst_7 [1] : vector<32x128xf32> to vector<32xf32>
    %23 = vector.shape_cast %22 : vector<32xf32> to vector<32x1xf32>
    %cst_8 = arith.constant 0.000000e+00 : f32
    %24 = vector.shape_cast %17 : vector<1x128xi1> to vector<1x128xi1>
    %25 = vector.broadcast %24 : vector<1x128xi1> to vector<32x128xi1>
    %26 = vector.shape_cast %23 : vector<32x1xf32> to vector<32x1xf32>
    %27 = vector.broadcast %26 : vector<32x1xf32> to vector<32x128xf32>
    %28 = vector.broadcast %cst_8 : f32 to vector<32x128xf32>
    %29 = arith.select %25, %27, %28 : vector<32x128xi1>, vector<32x128xf32>
    %30 = arith.subf %6, %29 : vector<32x128xf32>
    %31 = math.exp %30 : vector<32x128xf32>
    %cst_9 = arith.constant 0.000000e+00 : f32
    %32 = vector.shape_cast %17 : vector<1x128xi1> to vector<1x128xi1>
    %33 = vector.broadcast %32 : vector<1x128xi1> to vector<32x128xi1>
    %34 = vector.broadcast %cst_9 : f32 to vector<32x128xf32>
    %35 = arith.select %33, %31, %34 : vector<32x128xi1>, vector<32x128xf32>
    %cst_10 = arith.constant dense<0.000000e+00> : vector<32xf32>
    %36 = vector.multi_reduction <add>, %35, %cst_10 [1] : vector<32x128xf32> to vector<32xf32>
    %37 = vector.shape_cast %36 : vector<32xf32> to vector<32x1xf32>
    %38 = tpu.reciprocal %37 {approx = true} : vector<32x1xf32> -> vector<32x1xf32>
    %39 = vector.broadcast %38 : vector<32x1xf32> to vector<32x128xf32>
    %40 = arith.mulf %35, %39 : vector<32x128xf32>
    %41 = vector.shape_cast %12 : vector<1x128xi1> to vector<1x128xi1>
    %42 = vector.broadcast %41 : vector<1x128xi1> to vector<32x128xi1>
    %43 = arith.select %42, %31, %6 : vector<32x128xi1>, vector<32x128xf32>
    %44 = vector.shape_cast %17 : vector<1x128xi1> to vector<1x128xi1>
    %45 = vector.broadcast %44 : vector<1x128xi1> to vector<32x128xi1>
    %46 = arith.select %45, %40, %43 : vector<32x128xi1>, vector<32x128xf32>
    %c0_11 = arith.constant 0 : index
    %c0_12 = arith.constant 0 : index
    %47 = vector.load %arg4[%c0_11, %c0_12] : memref<32x128xf32, #tpu.memory_space<vmem>>, vector<32x128xf32>
    tpu.vector_store %arg4[%c0_11, %c0_12], %46 {strides = array<i32>} : memref<32x128xf32, #tpu.memory_space<vmem>>, vector<32x128xf32>,
    return
  }
  func.func @transform_0(%arg0: i32) -> (i32, i32) {
    %c0_i32 = arith.constant 0 : i32
    %c0_i32_0 = arith.constant 0 : i32
    return %arg0, %c0_i32 : i32, i32
  }
  func.func @transform_1(%arg0: i32) -> (i32, i32) {
    %c0_i32 = arith.constant 0 : i32
    %c0_i32_0 = arith.constant 0 : i32
    %c0_i32_1 = arith.constant 0 : i32
    return %c0_i32, %c0_i32_0 : i32, i32
  }
  func.func @transform_2(%arg0: i32) -> (i32, i32) {
    %c0_i32 = arith.constant 0 : i32
    %c0_i32_0 = arith.constant 0 : i32
    %c0_i32_1 = arith.constant 0 : i32
    return %c0_i32, %c0_i32_0 : i32, i32
  }
  func.func @transform_3(%arg0: i32) -> (i32, i32) {
    %c0_i32 = arith.constant 0 : i32
    %c0_i32_0 = arith.constant 0 : i32
    return %arg0, %c0_i32 : i32, i32
  }
}

</mosaic_0001>

<llo_original>
// kernel: tpu_custom_call.1
$region0: #{tpu_custom_call.1}
  #allocation0 [shape = 'u32[]', space=smem, size = 0x4, offset = 0x4, fixed_abs, tag = 'smem constant byte address 0x4 - core index']
  #allocation1 [shape = 'u32[144,128]{1,0:T(1,128)}', space=vmem, size = 0x12000, scoped, tag = 'internal scratch']
  %s0 = inlined_call_operand.hbm [shape: f32[32,128], index: 0, kind: input, shape index: {}]
  %s1 = inlined_call_operand.hbm [shape: f32[128,128], index: 1, kind: input, shape index: {}]
  %s2 = inlined_call_operand.vmem [shape: f32[1,128], index: 2, kind: input, shape index: {}]
  %s3 = inlined_call_operand.hbm [shape: f32[32,128], index: 3, kind: output, shape index: {}]
  %s4 = sld [smem:[#allocation0]]
  $region30: #{tpu_custom_call.1} parent=0
    _
  %s6 = ssub.s32 1, %s4
  %s7 = scalar_select 0, %s6, %s4
  $region1: #{tpu_custom_call.1} parent=0
    #allocation2 [shape = 'u8[16384]{0}', space=vmem, size = 0x4000, scoped, tag = 'input window, operand 0, single buffered']
    #allocation3 [shape = 's32[1]{0}', space=sflag, size = 0x4, scoped, tag = 'scoped memory for tpu_custom_call.1']
    #allocation4 [shape = 's32[1]{0}', space=sflag, size = 0x4, scoped, tag = 'scoped memory for tpu_custom_call.1']
    #allocation5 [shape = 'u8[65536]{0}', space=vmem, size = 0x10000, scoped, tag = 'input window, operand 1, single buffered']
    #allocation6 [shape = 's32[1]{0}', space=sflag, size = 0x4, scoped, tag = 'scoped memory for tpu_custom_call.1']
    #allocation7 [shape = 'u8[16384]{0}', space=vmem, size = 0x4000, scoped, tag = 'output window, operand 0, single buffered']
    %8 = vsyncpa [#allocation3], 0
    %9 = vsyncpa [#allocation6], 0
    %10 = vsyncpa [#allocation4], 0
    // Predicated region
    $region2: #{tpu_custom_call.1} parent=1 // pred_check
      _
    $region3: #{tpu_custom_call.1} parent=1 // pred_check_branch
      %12 = sbr.rel (0) target = $region5
    $region4: #{tpu_custom_call.1} parent=1 // pred_region
      %s14 = ssub.s32 512, 512
      %15 = vsyncadd [#allocation3], %s14
      %s16 = sshll.u32 [#allocation2], 4
      %s17 = int_to_ptr.vmem [resolvable:$true] %s16
      %22 = dma.hbm_to_vmem [thread:$0]  %s0, 512, %s17, [#allocation3], 128, 128, 8
    $region5: #{tpu_custom_call.1} parent=1 // pred_fallthru
      _
    // Predicated region
    $region6: #{tpu_custom_call.1} parent=1 // pred_check
      _
    $region7: #{tpu_custom_call.1} parent=1 // pred_check_branch
      %24 = sbr.rel (0) target = $region9
    $region8: #{tpu_custom_call.1} parent=1 // pred_region
      %s26 = ssub.s32 2048, 2048
      %27 = vsyncadd [#allocation6], %s26
      %s28 = sshll.u32 [#allocation5], 4
      %s29 = int_to_ptr.vmem [resolvable:$true] %s28
      %34 = dma.hbm_to_vmem [thread:$0]  %s1, 2048, %s29, [#allocation6], 128, 128, 8
    $region9: #{tpu_custom_call.1} parent=1 // pred_fallthru
      _
    // Predicated region
    $region10: #{tpu_custom_call.1} parent=1 // pred_check
      _
    $region11: #{tpu_custom_call.1} parent=1 // pred_check_branch
      %36 = sbr.rel (0) target = $region13
    $region12: #{tpu_custom_call.1} parent=1 // pred_region
      _
    $region13: #{tpu_custom_call.1} parent=1 // pred_fallthru
      _
    // Predicated region
    $region14: #{tpu_custom_call.1} parent=1 // pred_check
      _
    $region15: #{tpu_custom_call.1} parent=1 // pred_check_branch
      %38 = sbr.rel (0) target = $region17
    $region16: #{tpu_custom_call.1} parent=1 // pred_region
      %39 = dma.done [#allocation3], 512
    $region17: #{tpu_custom_call.1} parent=1 // pred_fallthru
      _
    // Predicated region
    $region18: #{tpu_custom_call.1} parent=1 // pred_check
      _
    $region19: #{tpu_custom_call.1} parent=1 // pred_check_branch
      %41 = sbr.rel (0) target = $region21
    $region20: #{tpu_custom_call.1} parent=1 // pred_region
      %42 = dma.done [#allocation6], 2048
    $region21: #{tpu_custom_call.1} parent=1 // pred_fallthru
      _
    %v43 = vld [vmem:[#allocation2] sm:$0xff]
    %v44 = vld [vmem:[#allocation2 + $0x8] sm:$0xff]
    %v45 = vld [vmem:[#allocation2 + $0x10] sm:$0xff]
    %v46 = vld [vmem:[#allocation2 + $0x18] sm:$0xff]
    %v47 = vtanh.pop %v43
    %v48 = vtanh.pop %v44
    %v49 = vtanh.pop %v45
    %v50 = vtanh.pop %v46
    %v51 = vld [vmem:[#allocation5] sm:$0xff]
    %v52 = vld [vmem:[#allocation5 + $0x8] sm:$0xff]
    %v53 = vld [vmem:[#allocation5 + $0x10] sm:$0xff]
    %v54 = vld [vmem:[#allocation5 + $0x18] sm:$0xff]
    %v55 = vld [vmem:[#allocation5 + $0x20] sm:$0xff]
    %v56 = vld [vmem:[#allocation5 + $0x28] sm:$0xff]
    %v57 = vld [vmem:[#allocation5 + $0x30] sm:$0xff]
    %v58 = vld [vmem:[#allocation5 + $0x38] sm:$0xff]
    %v59 = vld [vmem:[#allocation5 + $0x40] sm:$0xff]
    %v60 = vld [vmem:[#allocation5 + $0x48] sm:$0xff]
    %v61 = vld [vmem:[#allocation5 + $0x50] sm:$0xff]
    %v62 = vld [vmem:[#allocation5 + $0x58] sm:$0xff]
    %v63 = vld [vmem:[#allocation5 + $0x60] sm:$0xff]
    %v64 = vld [vmem:[#allocation5 + $0x68] sm:$0xff]
    %v65 = vld [vmem:[#allocation5 + $0x70] sm:$0xff]
    %v66 = vld [vmem:[#allocation5 + $0x78] sm:$0xff]
    %v67 = vld [vmem:[%s2] sm:$0x1]
    %v69 = vlaneseq
    %v70 = vshrl.u32 %v69, 7
    %v71 = vsub.s32 0, %v70
    %v72 = vrot.slane %v67, %v71
    %74 = vmatprep.subr.mxu0 0.0
    %75 = vmatpush1.msra.mxu0 %v51
    %76 = vmatprep.subr.mxu0 0.0
    %77 = vmatpush1.msra.mxu0 %v52
    %78 = vmatprep.subr.mxu0 0.0
    %79 = vmatpush1.msra.mxu0 %v53
    %80 = vmatprep.subr.mxu0 0.0
    %81 = vmatpush1.msra.mxu0 %v54
    %82 = vmatprep.subr.mxu0 0.0
    %83 = vmatpush1.msra.mxu0 %v55
    %84 = vmatprep.subr.mxu0 0.0
    %85 = vmatpush1.msra.mxu0 %v56
    %86 = vmatprep.subr.mxu0 0.0
    %87 = vmatpush1.msra.mxu0 %v57
    %88 = vmatprep.subr.mxu0 0.0
    %89 = vmatpush1.msra.mxu0 %v58
    %90 = vmatprep.subr.mxu0 0.0
    %91 = vmatpush1.msra.mxu0 %v59
    %92 = vmatprep.subr.mxu0 0.0
    %93 = vmatpush1.msra.mxu0 %v60
    %94 = vmatprep.subr.mxu0 0.0
    %95 = vmatpush1.msra.mxu0 %v61
    %96 = vmatprep.subr.mxu0 0.0
    %97 = vmatpush1.msra.mxu0 %v62
    %98 = vmatprep.subr.mxu0 0.0
    %99 = vmatpush1.msra.mxu0 %v63
    %100 = vmatprep.subr.mxu0 0.0
    %101 = vmatpush1.msra.mxu0 %v64
    %102 = vmatprep.subr.mxu0 0.0
    %103 = vmatpush1.msra.mxu0 %v65
    %104 = vmatprep.subr.mxu0 0.0
    %105 = vmatpush1.msra.mxu0 %v66
    %106 = vmatprep.subr.mxu0 0.0
    %107 = vmatpush1.msra.mxu0 0.0
    %108 = vmatprep.subr.mxu0 0.0
    %109 = vmatpush1.msra.mxu0 0.0
    %110 = vmatprep.subr.mxu0 0.0
    %111 = vmatpush1.msra.mxu0 0.0
    %112 = vmatprep.subr.mxu0 0.0
    %113 = vmatpush1.msra.mxu0 0.0
    %114 = vmatprep.subr.mxu0 0.0
    %115 = vmatpush1.msra.mxu0 0.0
    %116 = vmatprep.subr.mxu0 0.0
    %117 = vmatpush1.msra.mxu0 0.0
    %118 = vmatprep.subr.mxu0 0.0
    %119 = vmatpush1.msra.mxu0 0.0
    %120 = vmatprep.subr.mxu0 0.0
    %121 = vmatpush1.msra.mxu0 0.0
    %122 = vmatprep.subr.mxu0 0.0
    %123 = vmatpush1.msra.mxu0 0.0
    %124 = vmatprep.subr.mxu0 0.0
    %125 = vmatpush1.msra.mxu0 0.0
    %126 = vmatprep.subr.mxu0 0.0
    %127 = vmatpush1.msra.mxu0 0.0
    %128 = vmatprep.subr.mxu0 0.0
    %129 = vmatpush1.msra.mxu0 0.0
    %130 = vmatprep.subr.mxu0 0.0
    %131 = vmatpush1.msra.mxu0 0.0
    %132 = vmatprep.subr.mxu0 0.0
    %133 = vmatpush1.msra.mxu0 0.0
    %134 = vmatprep.subr.mxu0 0.0
    %135 = vmatpush1.msra.mxu0 0.0
    %136 = vmatprep.subr.mxu0 0.0
    %137 = vmatpush1.msra.mxu0 0.0
    %138 = vmatprep.mubr.f32.mxu0 0.0
    %139 = vmatmul.mubr.f32.gmra.mrb[0].mxu0 %v47
    %v140 = vpop.f32.mrb[0].mxu0
    %v141 = vadd.f32 %v72, %v140
    %v142 = vpop.f32.mrb[0].mxu0
    %143 = vmatprep.mubr.f32.mxu0 0.0
    %144 = vmatmul.mubr.f32.gmra.mrb[0].mxu0 %v48
    %v145 = vpop.f32.mrb[0].mxu0
    %v146 = vadd.f32 %v72, %v145
    %v147 = vpop.f32.mrb[0].mxu0
    %148 = vmatprep.mubr.f32.mxu0 0.0
    %149 = vmatmul.mubr.f32.gmra.mrb[0].mxu0 %v49
    %v150 = vpop.f32.mrb[0].mxu0
    %v151 = vadd.f32 %v72, %v150
    %v152 = vpop.f32.mrb[0].mxu0
    %153 = vmatprep.mubr.f32.mxu0 0.0
    %154 = vmatmul.mubr.f32.gmra.mrb[0].mxu0 %v50
    %v155 = vpop.f32.mrb[0].mxu0
    %v156 = vadd.f32 %v72, %v155
    %v157 = vpop.f32.mrb[0].mxu0
    %158 = vdwg.mxu0
    %v159 = vlaneseq
    %v160 = vand.u32 %v159, 127
    %vm161 = vcmp.ge.s32.totalorder %v160, 16
    %vm162 = vcmp.lt.s32.totalorder %v160, 20
    %vm163 = vmand %vm161, %vm162
    %vm164 = vcmp.ge.s32.totalorder %v160, 20
    %vm165 = vcmp.lt.s32.totalorder %v160, 24
    %vm166 = vmand %vm164, %vm165
    %v167 = vsel %vm166, 1, 0
    %vm168 = vcmp.eq.s32.totalorder %v167, 1
    %v169 = vsel %vm168, %v141, -inf
    %v170 = vsel %vm168, %v146, -inf
    %v171 = vsel %vm168, %v151, -inf
    %v172 = vsel %vm168, %v156, -inf
    %173 = vmax.xlane.f32.xlu0 %v169
    %v174 = vpop.xlane.xlu0 %173
    %175 = vmax.xlane.f32.xlu0 %v170
    %v176 = vpop.xlane.xlu0 %175
    %177 = vmax.xlane.f32.xlu0 %v171
    %v178 = vpop.xlane.xlu0 %177
    %179 = vmax.xlane.f32.xlu0 %v172
    %v180 = vpop.xlane.xlu0 %179
    %v181 = vsel %vm168, %v174, 0.0
    %v182 = vsel %vm168, %v176, 0.0
    %v183 = vsel %vm168, %v178, 0.0
    %v184 = vsel %vm168, %v180, 0.0
    %v185 = vsub.f32 %v141, %v181
    %v186 = vsub.f32 %v146, %v182
    %v187 = vsub.f32 %v151, %v183
    %v188 = vsub.f32 %v156, %v184
    %v189 = vmul.f32 %v185, 1.442695
    %v190 = vpow.pop %v189
    %v191 = vmul.f32 %v186, 1.442695
    %v192 = vpow.pop %v191
    %v193 = vmul.f32 %v187, 1.442695
    %v194 = vpow.pop %v193
    %v195 = vmul.f32 %v188, 1.442695
    %v196 = vpow.pop %v195
    %v197 = vsel %vm168, %v190, 0.0
    %v198 = vsel %vm168, %v192, 0.0
    %v199 = vsel %vm168, %v194, 0.0
    %v200 = vsel %vm168, %v196, 0.0
    %201 = vadd.xlane.f32.xlu0 %v197
    %v202 = vpop.xlane.xlu0 %201
    %203 = vadd.xlane.f32.xlu0 %v198
    %v204 = vpop.xlane.xlu0 %203
    %205 = vadd.xlane.f32.xlu0 %v199
    %v206 = vpop.xlane.xlu0 %205
    %207 = vadd.xlane.f32.xlu0 %v200
    %v208 = vpop.xlane.xlu0 %207
    %v209 = vrcp.pop %v202
    %v210 = vrcp.pop %v204
    %v211 = vrcp.pop %v206
    %v212 = vrcp.pop %v208
    %v213 = vmul.f32 %v197, %v209
    %v214 = vmul.f32 %v198, %v210
    %v215 = vmul.f32 %v199, %v211
    %v216 = vmul.f32 %v200, %v212
    %v217 = vsel %vm163, 1, 0
    %vm218 = vcmp.eq.s32.totalorder %v217, 1
    %v219 = vsel %vm218, %v190, %v141
    %v220 = vsel %vm218, %v192, %v146
    %v221 = vsel %vm218, %v194, %v151
    %v222 = vsel %vm218, %v196, %v156
    %v223 = vsel %vm168, %v213, %v219
    %v224 = vsel %vm168, %v214, %v220
    %v225 = vsel %vm168, %v215, %v221
    %v226 = vsel %vm168, %v216, %v222
    %227 = vst [vmem:[#allocation7] sm:$0xff] %v223
    %228 = vst [vmem:[#allocation7 + $0x8] sm:$0xff] %v224
    %229 = vst [vmem:[#allocation7 + $0x10] sm:$0xff] %v225
    %230 = vst [vmem:[#allocation7 + $0x18] sm:$0xff] %v226
    // Predicated region
    $region22: #{tpu_custom_call.1} parent=1 // pred_check
      _
    $region23: #{tpu_custom_call.1} parent=1 // pred_check_branch
      %232 = sbr.rel (0) target = $region25
    $region24: #{tpu_custom_call.1} parent=1 // pred_region
      %s234 = ssub.s32 512, 512
      %235 = vsyncadd [#allocation4], %s234
      %s236 = sshll.u32 [#allocation7], 4
      %s237 = int_to_ptr.vmem [resolvable:$true] %s236
      %242 = dma.vmem_to_hbm [thread:$0]  %s237, 512, %s3, [#allocation4], 128, 128, 8
    $region25: #{tpu_custom_call.1} parent=1 // pred_fallthru
      _
    // Predicated region
    $region26: #{tpu_custom_call.1} parent=1 // pred_check
      _
    $region27: #{tpu_custom_call.1} parent=1 // pred_check_branch
      %244 = sbr.rel (0) target = $region29
    $region28: #{tpu_custom_call.1} parent=1 // pred_region
      %245 = dma.done [#allocation4], 512
    $region29: #{tpu_custom_call.1} parent=1 // pred_fallthru
      _
    %246 = vsyncpa [#allocation3], 1
    %247 = vsyncpa [#allocation6], 1
    %248 = vsyncpa [#allocation4], 1

</llo_original>
